<compile_context>
chip_gen: v7x
topology: tpu7x:2x2x1
jax: 0.10.0
libtpu: 0.0.40
codegen_flags: <defaults>
</compile_context>

<pallas_src>
import functools

import jax
import jax.numpy as jnp
from jax.experimental import pallas as pl
from jax.experimental.pallas import tpu as pltpu


def _ce_loss_kernel(pred_ref, tgt_ref, out_ref, m_ref, s_ref, t_ref, *,
                    n_total, n_classes, mask_cols, f32_elementwise):
    i = pl.program_id(0)          # batch-tile index ("parallel")
    j = pl.program_id(1)          # class-tile index ("arbitrary" reduction)
    nj = pl.num_programs(1)

    @pl.when(j == 0)
    def _init():
        m_ref[...] = jnp.full_like(m_ref, -jnp.inf)
        s_ref[...] = jnp.zeros_like(s_ref)
        t_ref[...] = jnp.zeros_like(t_ref)

    x = pred_ref[...]                               # (tile_n, tile_c) wire dtype
    if f32_elementwise:
        # TODO(synk): keep this path as the default on v5e (no bf16 VPU/EUP)
        # once get_tpu_info exposes the chip generation reliably.
        x = x.astype(jnp.float32)
    elem_dtype = x.dtype
    tn, tc = x.shape

    col_ids = jax.lax.broadcasted_iota(jnp.int32, (tn, tc), 1)

    if mask_cols:
        # Last class tile may be partial: OOB lanes hold garbage, force them
        # to a huge negative so they never win the max and exp() to 0.
        fill = jnp.asarray(jnp.finfo(elem_dtype).min, dtype=elem_dtype)
        valid = (col_ids + j * tc) < n_classes
        x = jnp.where(valid, x, fill)

    # ---- target-logit gather (masked select; at most one hit per row) ----
    # Note: out-of-range target ids silently contribute 0 (PyTorch would
    # raise); acceptable for this kernel's semantics.
    local_tgt = tgt_ref[...] - j * tc               # (tile_n, 1) int32
    hit = col_ids == local_tgt
    t_blk = jnp.sum(jnp.where(hit, x, jnp.zeros_like(x)), axis=1, keepdims=True)
    t_ref[...] += t_blk.astype(jnp.float32)

    # ---- online (flash-style) logsumexp over the class axis ----
    m_prev = m_ref[...]                             # (tile_n, 1) f32
    m_blk = jnp.max(x, axis=1, keepdims=True).astype(jnp.float32)
    m_new = jnp.maximum(m_prev, m_blk)
    # Subtract in the wire dtype (packed VALU for bf16); exp/sum stay f32.
    shifted = x - m_new.astype(elem_dtype)
    p = jnp.exp(shifted.astype(jnp.float32))
    alpha = jnp.exp(m_prev - m_new)
    s_ref[...] = s_ref[...] * alpha + jnp.sum(p, axis=1, keepdims=True)
    m_ref[...] = m_new

    @pl.when(j == nj - 1)
    def _finalize():
        lse = jnp.log(s_ref[...]) + m_ref[...]
        nll = lse - t_ref[...]
        # Mask rows of a partial last batch tile (OOB rows hold garbage;
        # keep this a select so NaN/Inf cannot leak into valid rows).
        row_ids = jax.lax.broadcasted_iota(jnp.int32, (tn, 1), 0) + i * tn
        out_ref[...] = jnp.where(row_ids < n_total, nll, 0.0).astype(out_ref.dtype)


def _vmem_capacity_bytes():
    # Generation-aware: 64 MiB per TC on v7x, 128 MiB on v5e/v6e.
    try:
        return int(pltpu.get_tpu_info().vmem_capacity_bytes)
    except Exception:
        return 64 * 1024 * 1024   # conservative fallback


def _auto_tiles(n, c, vmem_cap):
    # Budget the f32 tile-sized temporaries (upcast, exp, iota, select) at
    # ~1/16 of physical VMEM: 4 MiB on v7x, 8 MiB on v5e/v6e.  With 2x
    # double-buffered wire tiles this keeps total live VMEM well under the
    # scoped limit.
    f32_tile_budget = max(vmem_cap // 16, 1 << 19)
    if c * 4 * 8 <= f32_tile_budget:
        tile_c = c                                   # full class row fits
    else:
        # Vocab-scale C: block the class axis (multiple of 128 lanes) so the
        # batch tile can stay at a few hundred rows.
        tile_c = max(128, (f32_tile_budget // (256 * 4)) // 128 * 128)
        tile_c = min(tile_c, c // 128 * 128)
    tile_n = max(8, f32_tile_budget // (tile_c * 4) // 8 * 8)
    return tile_n, tile_c


def ce_loss(pred: jax.Array, target: jax.Array, *, tile_n=None, tile_c=None,
            bf16_elementwise=None) -> jax.Array:
    """pred: (N, C) float logits, target: (N,) integer class ids -> scalar f32."""
    n, c = pred.shape
    itemsize = jnp.dtype(pred.dtype).itemsize
    vmem_cap = _vmem_capacity_bytes()

    auto_n, auto_c = _auto_tiles(n, c, vmem_cap)
    tile_n = auto_n if tile_n is None else max(8, (int(tile_n) + 7) // 8 * 8)
    tile_c = auto_c if tile_c is None else int(tile_c)
    if tile_c >= c or c <= 128:
        tile_c = c
    else:
        tile_c = max(128, tile_c // 128 * 128)       # lane-aligned class blocks
    tile_n = min(tile_n, max(8, (n + 7) // 8 * 8))   # never exceed padded batch

    if bf16_elementwise is None:
        bf16_elementwise = pred.dtype == jnp.bfloat16

    grid = (pl.cdiv(n, tile_n), pl.cdiv(c, tile_c))

    tgt = target.astype(jnp.int32).reshape(n, 1)

    kernel = functools.partial(
        _ce_loss_kernel,
        n_total=n,
        n_classes=c,
        mask_cols=(c % tile_c != 0),
        f32_elementwise=not bf16_elementwise,
    )

    nll_rows = pl.pallas_call(
        kernel,
        out_shape=jax.ShapeDtypeStruct((n, 1), jnp.float32),
        grid=grid,
        in_specs=[
            pl.BlockSpec((tile_n, tile_c), lambda i, j: (i, j)),
            pl.BlockSpec((tile_n, 1), lambda i, j: (i, 0)),
        ],
        out_specs=pl.BlockSpec((tile_n, 1), lambda i, j: (i, 0)),
        scratch_shapes=[
            pltpu.VMEM((tile_n, 1), jnp.float32),    # running max m
            pltpu.VMEM((tile_n, 1), jnp.float32),    # running sum of exp
            pltpu.VMEM((tile_n, 1), jnp.float32),    # target logit
        ],
        compiler_params=pltpu.CompilerParams(
            dimension_semantics=("parallel", "arbitrary"),
            vmem_limit_bytes=int(vmem_cap * 3 // 4),
        ),
        cost_estimate=pl.CostEstimate(
            flops=int(5 * n * c),
            transcendentals=int(n * c + 2 * n),
            bytes_accessed=int(n * c * itemsize + n * 4 + n * 4),
        ),
    )(pred, tgt)

    # Tiny (N,) reduction + mean in plain XLA; the kernel stays "parallel".
    return jnp.sum(nll_rows) / jnp.float32(n)


if __name__ == "__main__":
    key = jax.random.PRNGKey(0)
    k1, k2, k3, k4 = jax.random.split(key, 4)

    # Case 1: small C (single class tile), N=20 with tile_n=8 -> 3 batch tiles
    # including a partial (masked) last tile; no wrapper-side padding.
    N, C = 20, 32
    pred = jax.random.normal(k1, (N, C), dtype=jnp.float32)
    target = jax.random.randint(k2, (N,), 0, C, dtype=jnp.int32)
    loss = ce_loss(pred, target, tile_n=8)
    jax.block_until_ready(loss)
    logp = jax.nn.log_softmax(pred, axis=1)
    ref = -jnp.sum(logp[jnp.arange(N), target]) / N
    assert jnp.allclose(loss, ref, rtol=1e-5, atol=1e-5), (loss, ref)

    # Case 2: C-blocked online logsumexp (C=300, tile_c=128 -> 3 class tiles,
    # last one lane-masked) plus a partial last batch tile.
    N2, C2 = 20, 300
    pred2 = jax.random.normal(k3, (N2, C2), dtype=jnp.float32)
    target2 = jax.random.randint(k4, (N2,), 0, C2, dtype=jnp.int32)
    loss2 = ce_loss(pred2, target2, tile_n=8, tile_c=128)
    jax.block_until_ready(loss2)
    logp2 = jax.nn.log_softmax(pred2, axis=1)
    ref2 = -jnp.sum(logp2[jnp.arange(N2), target2]) / N2
    assert jnp.allclose(loss2, ref2, rtol=1e-5, atol=1e-5), (loss2, ref2)

    # Case 3: bf16 on the wire; elementwise work stays packed bf16 while
    # exp/log/accumulation are f32 (slightly looser tolerance from the
    # bf16 (x - m) rounding).
    pred_bf16 = pred2.astype(jnp.bfloat16)
    loss_bf16 = ce_loss(pred_bf16, target2, tile_n=8, tile_c=128)
    jax.block_until_ready(loss_bf16)
    logp_bf = jax.nn.log_softmax(pred_bf16.astype(jnp.float32), axis=1)
    ref_bf = -jnp.sum(logp_bf[jnp.arange(N2), target2]) / N2
    assert jnp.allclose(loss_bf16, ref_bf, rtol=2e-2, atol=2e-2), (loss_bf16, ref_bf)

    # Case 4: default (auto) tiling path.
    loss_d = ce_loss(pred2, target2)
    jax.block_until_ready(loss_d)
    assert jnp.allclose(loss_d, ref2, rtol=1e-5, atol=1e-5), (loss_d, ref2)

    print("KERNEL_OK")
</pallas_src>

<mosaic_0001>
module attributes {stable_mosaic.version = 11 : i64} {
  func.func @_ce_loss_kernel(%arg0: i32, %arg1: i32, %arg2: memref<8x32xf32, #tpu.memory_space<vmem>>, %arg3: memref<8x1xi32, #tpu.memory_space<vmem>>, %arg4: memref<8x1xf32, #tpu.memory_space<vmem>>, %arg5: memref<8x1xf32, #tpu.memory_space<vmem>>, %arg6: memref<8x1xf32, #tpu.memory_space<vmem>>, %arg7: memref<8x1xf32, #tpu.memory_space<vmem>>) attributes {dimension_semantics = [#tpu.dimension_semantics<parallel>, #tpu.dimension_semantics<arbitrary>], iteration_bounds = array<i64: 3, 1>, scalar_prefetch = 0 : i64, scratch_operands = 3 : i64, tpu.core_type = #tpu.core_type<tc>, window_params = [{transform_indices = @transform_0, window_bounds = array<i64: 8, 32>}, {transform_indices = @transform_1, window_bounds = array<i64: 8, 1>}, {transform_indices = @transform_2, window_bounds = array<i64: 8, 1>}]} {
    %c0_i32 = arith.constant 0 : i32
    %0 = arith.cmpi eq, %arg1, %c0_i32 : i32
    %1 = arith.extui %0 : i1 to i32
    %c0_i32_0 = arith.constant 0 : i32
    %2 = arith.cmpi ne, %1, %c0_i32_0 : i32
    scf.if %2 {
      %cst_21 = arith.constant 0xFF800000 : f32
      %37 = vector.broadcast %cst_21 : f32 to vector<8x1xf32>
      %c0_22 = arith.constant 0 : index
      %c0_23 = arith.constant 0 : index
      %38 = vector.load %arg5[%c0_22, %c0_23] : memref<8x1xf32, #tpu.memory_space<vmem>>, vector<8x1xf32>
      tpu.vector_store %arg5[%c0_22, %c0_23], %37 {strides = array<i32>} : memref<8x1xf32, #tpu.memory_space<vmem>>, vector<8x1xf32>,
      %cst_24 = arith.constant 0.000000e+00 : f32
      %39 = vector.broadcast %cst_24 : f32 to vector<8x1xf32>
      %c0_25 = arith.constant 0 : index
      %c0_26 = arith.constant 0 : index
      %40 = vector.load %arg6[%c0_25, %c0_26] : memref<8x1xf32, #tpu.memory_space<vmem>>, vector<8x1xf32>
      tpu.vector_store %arg6[%c0_25, %c0_26], %39 {strides = array<i32>} : memref<8x1xf32, #tpu.memory_space<vmem>>, vector<8x1xf32>,
      %cst_27 = arith.constant 0.000000e+00 : f32
      %41 = vector.broadcast %cst_27 : f32 to vector<8x1xf32>
      %c0_28 = arith.constant 0 : index
      %c0_29 = arith.constant 0 : index
      %42 = vector.load %arg7[%c0_28, %c0_29] : memref<8x1xf32, #tpu.memory_space<vmem>>, vector<8x1xf32>
      tpu.vector_store %arg7[%c0_28, %c0_29], %41 {strides = array<i32>} : memref<8x1xf32, #tpu.memory_space<vmem>>, vector<8x1xf32>,
    } else {
    }
    %c0 = arith.constant 0 : index
    %c0_1 = arith.constant 0 : index
    %3 = vector.load %arg2[%c0, %c0_1] : memref<8x32xf32, #tpu.memory_space<vmem>>, vector<8x32xf32>
    %4 = tpu.iota {dimensions = array<i32: 1>} : vector<8x32xi32>
    %c0_2 = arith.constant 0 : index
    %c0_3 = arith.constant 0 : index
    %5 = vector.load %arg3[%c0_2, %c0_3] : memref<8x1xi32, #tpu.memory_space<vmem>>, vector<8x1xi32>
    %c32_i32 = arith.constant 32 : i32
    %6 = arith.muli %arg1, %c32_i32 : i32
    %7 = vector.broadcast %6 : i32 to vector<8x1xi32>
    %8 = arith.subi %5, %7 : vector<8x1xi32>
    %9 = vector.broadcast %8 : vector<8x1xi32> to vector<8x32xi32>
    %10 = arith.cmpi eq, %4, %9 : vector<8x32xi32>
    %cst = arith.constant 0.000000e+00 : f32
    %11 = vector.broadcast %cst : f32 to vector<8x32xf32>
    %12 = arith.select %10, %3, %11 : vector<8x32xi1>, vector<8x32xf32>
    %cst_4 = arith.constant dense<0.000000e+00> : vector<8xf32>
    %13 = vector.multi_reduction <add>, %12, %cst_4 [1] : vector<8x32xf32> to vector<8xf32>
    %14 = vector.shape_cast %13 : vector<8xf32> to vector<8x1xf32>
    %c0_5 = arith.constant 0 : index
    %c0_6 = arith.constant 0 : index
    %15 = vector.load %arg7[%c0_5, %c0_6] : memref<8x1xf32, #tpu.memory_space<vmem>>, vector<8x1xf32>
    %16 = arith.addf %15, %14 : vector<8x1xf32>
    %c0_7 = arith.constant 0 : index
    %c0_8 = arith.constant 0 : index
    %17 = vector.load %arg7[%c0_7, %c0_8] : memref<8x1xf32, #tpu.memory_space<vmem>>, vector<8x1xf32>
    tpu.vector_store %arg7[%c0_7, %c0_8], %16 {strides = array<i32>} : memref<8x1xf32, #tpu.memory_space<vmem>>, vector<8x1xf32>,
    %c0_9 = arith.constant 0 : index
    %c0_10 = arith.constant 0 : index
    %18 = vector.load %arg5[%c0_9, %c0_10] : memref<8x1xf32, #tpu.memory_space<vmem>>, vector<8x1xf32>
    %cst_11 = arith.constant dense<0xFF800000> : vector<8xf32>
    %19 = vector.multi_reduction <maximumf>, %3, %cst_11 [1] : vector<8x32xf32> to vector<8xf32>
    %20 = vector.shape_cast %19 : vector<8xf32> to vector<8x1xf32>
    %21 = arith.maximumf %18, %20 : vector<8x1xf32>
    %22 = vector.broadcast %21 : vector<8x1xf32> to vector<8x32xf32>
    %23 = arith.subf %3, %22 : vector<8x32xf32>
    %24 = math.exp %23 : vector<8x32xf32>
    %25 = arith.subf %18, %21 : vector<8x1xf32>
    %26 = math.exp %25 : vector<8x1xf32>
    %c0_12 = arith.constant 0 : index
    %c0_13 = arith.constant 0 : index
    %27 = vector.load %arg6[%c0_12, %c0_13] : memref<8x1xf32, #tpu.memory_space<vmem>>, vector<8x1xf32>
    %28 = arith.mulf %27, %26 : vector<8x1xf32>
    %cst_14 = arith.constant dense<0.000000e+00> : vector<8xf32>
    %29 = vector.multi_reduction <add>, %24, %cst_14 [1] : vector<8x32xf32> to vector<8xf32>
    %30 = vector.shape_cast %29 : vector<8xf32> to vector<8x1xf32>
    %31 = arith.addf %28, %30 : vector<8x1xf32>
    %c0_15 = arith.constant 0 : index
    %c0_16 = arith.constant 0 : index
    %32 = vector.load %arg6[%c0_15, %c0_16] : memref<8x1xf32, #tpu.memory_space<vmem>>, vector<8x1xf32>
    tpu.vector_store %arg6[%c0_15, %c0_16], %31 {strides = array<i32>} : memref<8x1xf32, #tpu.memory_space<vmem>>, vector<8x1xf32>,
    %c0_17 = arith.constant 0 : index
    %c0_18 = arith.constant 0 : index
    %33 = vector.load %arg5[%c0_17, %c0_18] : memref<8x1xf32, #tpu.memory_space<vmem>>, vector<8x1xf32>
    tpu.vector_store %arg5[%c0_17, %c0_18], %21 {strides = array<i32>} : memref<8x1xf32, #tpu.memory_space<vmem>>, vector<8x1xf32>,
    %c0_i32_19 = arith.constant 0 : i32
    %34 = arith.cmpi eq, %arg1, %c0_i32_19 : i32
    %35 = arith.extui %34 : i1 to i32
    %c0_i32_20 = arith.constant 0 : i32
    %36 = arith.cmpi ne, %35, %c0_i32_20 : i32
    scf.if %36 {
      %c0_21 = arith.constant 0 : index
      %c0_22 = arith.constant 0 : index
      %37 = vector.load %arg6[%c0_21, %c0_22] : memref<8x1xf32, #tpu.memory_space<vmem>>, vector<8x1xf32>
      %38 = math.log %37 : vector<8x1xf32>
      %c0_23 = arith.constant 0 : index
      %c0_24 = arith.constant 0 : index
      %39 = vector.load %arg5[%c0_23, %c0_24] : memref<8x1xf32, #tpu.memory_space<vmem>>, vector<8x1xf32>
      %40 = arith.addf %38, %39 : vector<8x1xf32>
      %c0_25 = arith.constant 0 : index
      %c0_26 = arith.constant 0 : index
      %41 = vector.load %arg7[%c0_25, %c0_26] : memref<8x1xf32, #tpu.memory_space<vmem>>, vector<8x1xf32>
      %42 = arith.subf %40, %41 : vector<8x1xf32>
      %43 = tpu.iota {dimensions = array<i32: 0>} : vector<8x1xi32>
      %c8_i32 = arith.constant 8 : i32
      %44 = arith.muli %arg0, %c8_i32 : i32
      %45 = vector.broadcast %44 : i32 to vector<8x1xi32>
      %46 = arith.addi %43, %45 : vector<8x1xi32>
      %c20_i32 = arith.constant 20 : i32
      %47 = vector.broadcast %c20_i32 : i32 to vector<8x1xi32>
      %48 = arith.cmpi slt, %46, %47 : vector<8x1xi32>
      %cst_27 = arith.constant 0.000000e+00 : f32
      %49 = vector.broadcast %cst_27 : f32 to vector<8x1xf32>
      %50 = arith.select %48, %42, %49 : vector<8x1xi1>, vector<8x1xf32>
      %c0_28 = arith.constant 0 : index
      %c0_29 = arith.constant 0 : index
      %51 = vector.load %arg4[%c0_28, %c0_29] : memref<8x1xf32, #tpu.memory_space<vmem>>, vector<8x1xf32>
      tpu.vector_store %arg4[%c0_28, %c0_29], %50 {strides = array<i32>} : memref<8x1xf32, #tpu.memory_space<vmem>>, vector<8x1xf32>,
    } else {
    }
    return
  }
  func.func @transform_0(%arg0: i32, %arg1: i32) -> (i32, i32) {
    %c0_i32 = arith.constant 0 : i32
    return %arg0, %arg1 : i32, i32
  }
  func.func @transform_1(%arg0: i32, %arg1: i32) -> (i32, i32) {
    %c0_i32 = arith.constant 0 : i32
    %c0_i32_0 = arith.constant 0 : i32
    return %arg0, %c0_i32 : i32, i32
  }
  func.func @transform_2(%arg0: i32, %arg1: i32) -> (i32, i32) {
    %c0_i32 = arith.constant 0 : i32
    %c0_i32_0 = arith.constant 0 : i32
    return %arg0, %c0_i32 : i32, i32
  }
}

</mosaic_0001>

<llo_original>
// kernel: tpu_custom_call.1
$region0: #{tpu_custom_call.1}
  #allocation0 [shape = 'u32[]', space=smem, size = 0x4, offset = 0x4, fixed_abs, tag = 'smem constant byte address 0x4 - core index']
  #allocation1 [shape = 'u32[144,128]{1,0:T(1,128)}', space=vmem, size = 0x12000, scoped, tag = 'internal scratch']
  #allocation2 [shape = 'f32[8,1]{1,0:T(8,128)}', space=vmem, size = 0x1000, scoped, tag = 'scratch operand']
  #allocation3 [shape = 'f32[8,1]{1,0:T(8,128)}', space=vmem, size = 0x1000, scoped, tag = 'scratch operand']
  #allocation4 [shape = 'f32[8,1]{1,0:T(8,128)}', space=vmem, size = 0x1000, scoped, tag = 'scratch operand']
  %s0 = inlined_call_operand.vmem [shape: f32[20,32], index: 0, kind: input, shape index: {}]
  %s1 = inlined_call_operand.vmem [shape: s32[20,1], index: 1, kind: input, shape index: {}]
  %s2 = inlined_call_operand.vmem [shape: f32[20,1], index: 2, kind: output, shape index: {}]
  %s3 = sld [smem:[#allocation0]]
  $region49: #{tpu_custom_call.1} parent=0
    _
  %s5 = ssub.s32 1, %s3
  %s6 = scalar_select 0, %s5, %s3
  loop: start=0, step=1, limit=5
  $region2: #{tpu_custom_call.1} parent=0 // loop_pre_header
    _
  $region3: #{tpu_custom_call.1} parent=0 // loop_header
    %s8 = sphi 0, %s12
    %p9 = scmp.ge.s32.totalorder %s8, 5
    %s15 = sphi 0, %s27
    %s16 = sphi 0, %s23
    %s17 = sphi 0, %s15
    %s18 = sphi 0, %s16
    %s19 = sphi 0, %s17
    %s20 = sphi 0, %s18
    %s32 = sphi 0, %s34
    %s35 = sphi 0, %s32
    %s36 = sphi 0, %s35
    %s52 = sphi 0, %s36
    %s58 = sphi 0, %s60
    %s61 = sphi 0, %s58
    %s62 = sphi 0, %s61
    %s78 = sphi 0, %s62
    %s84 = sphi 0, %s86
    %s87 = sphi 0, %s84
    %s88 = sphi 0, %s87
    %s104 = sphi 0, %s88
  $region4: #{tpu_custom_call.1} parent=0 // loop_header_branch
    %11 = sbr.rel (%p9) target = $region8
  $region5: #{tpu_custom_call.1} parent=0 // loop_body
    %s13 = ssub.s32 %s8, 1
    %s14 = ssub.s32 %s8, 2
    %s21 = sadd.s32 1, %s16
    %p22 = scmp.ge.s32.totalorder %s21, 1
    %s23 = scalar_select %p22, 0, %s21
    %s24 = sadd.s32 1, %s15
    %s25 = scalar_select %p22, %s24, %s15
    %p26 = scmp.ge.s32.totalorder %s25, 3
    %s27 = scalar_select %p26, 0, %s25
    %s28 = ssub.s32 %s15, %s27
    %s29 = ssub.s32 %s16, %s23
    %s30 = sor.u32 %s28, %s29
    %p31 = scmp.eq.s32.totalorder %s30, 0
    %s33 = sadd.s32 %s32, 1
    %s34 = scalar_select %p31, %s32, %s33
    %p37 = pneg %p31
    %p38 = scmp.eq.s32.totalorder %s8, 2
    %p39 = por %p37, %p38
    %p40 = scmp.ne.s32.totalorder %s32, %s35
    %p41 = scmp.eq.s32.totalorder %s8, 0
    %p42 = por %p40, %p41
    %p43 = scmp.ne.s32.totalorder %s32, %s35
    %p44 = scmp.eq.s32.totalorder %s13, 2
    %p45 = por %p43, %p44
    %p46 = scmp.ne.s32.totalorder %s35, %s36
    %p47 = scmp.eq.s32.totalorder %s13, 0
    %p48 = por %p46, %p47
    %p49 = scmp.ne.s32.totalorder %s35, %s36
    %p50 = scmp.eq.s32.totalorder %s14, 2
    %p51 = por %p49, %p50
    %p53 = scmp.ne.s32.totalorder %s36, %s52
    %p54 = scmp.eq.s32.totalorder %s14, 0
    %p55 = por %p53, %p54
    %s56 = ssub.s32 %s15, %s27
    %p57 = scmp.eq.s32.totalorder %s56, 0
    %s59 = sadd.s32 %s58, 1
    %s60 = scalar_select %p57, %s58, %s59
    %p63 = pneg %p57
    %p64 = scmp.eq.s32.totalorder %s8, 2
    %p65 = por %p63, %p64
    %p66 = scmp.ne.s32.totalorder %s58, %s61
    %p67 = scmp.eq.s32.totalorder %s8, 0
    %p68 = por %p66, %p67
    %p69 = scmp.ne.s32.totalorder %s58, %s61
    %p70 = scmp.eq.s32.totalorder %s13, 2
    %p71 = por %p69, %p70
    %p72 = scmp.ne.s32.totalorder %s61, %s62
    %p73 = scmp.eq.s32.totalorder %s13, 0
    %p74 = por %p72, %p73
    %p75 = scmp.ne.s32.totalorder %s61, %s62
    %p76 = scmp.eq.s32.totalorder %s14, 2
    %p77 = por %p75, %p76
    %p79 = scmp.ne.s32.totalorder %s62, %s78
    %p80 = scmp.eq.s32.totalorder %s14, 0
    %p81 = por %p79, %p80
    %s82 = ssub.s32 %s15, %s27
    %p83 = scmp.eq.s32.totalorder %s82, 0
    %s85 = sadd.s32 %s84, 1
    %s86 = scalar_select %p83, %s84, %s85
    %p89 = pneg %p83
    %p90 = scmp.eq.s32.totalorder %s8, 2
    %p91 = por %p89, %p90
    %p92 = scmp.ne.s32.totalorder %s84, %s87
    %p93 = scmp.eq.s32.totalorder %s8, 0
    %p94 = por %p92, %p93
    %p95 = scmp.ne.s32.totalorder %s84, %s87
    %p96 = scmp.eq.s32.totalorder %s13, 2
    %p97 = por %p95, %p96
    %p98 = scmp.ne.s32.totalorder %s87, %s88
    %p99 = scmp.eq.s32.totalorder %s13, 0
    %p100 = por %p98, %p99
    %p101 = scmp.ne.s32.totalorder %s87, %s88
    %p102 = scmp.eq.s32.totalorder %s14, 2
    %p103 = por %p101, %p102
    %p105 = scmp.ne.s32.totalorder %s88, %s104
    %p106 = scmp.eq.s32.totalorder %s14, 0
    %p107 = por %p105, %p106
    %p108 = scmp.le.s32.totalorder 1, %s8
    %p109 = scmp.lt.s32.totalorder %s8, 4
    %p110 = pnand %p108, %p109
    %p111 = pneg %p110
    // Predicated region
    $region9: #{tpu_custom_call.1} parent=5 // pred_check
      _
    $region10: #{tpu_custom_call.1} parent=5 // pred_check_branch
      %113 = sbr.rel (%p110) target = $region12
    $region11: #{tpu_custom_call.1} parent=5 // pred_region
      %s114 = ssub.s32 %s8, 1
    $region12: #{tpu_custom_call.1} parent=5 // pred_fallthru
      _
    %p115 = scmp.lt.s32.totalorder %s8, 3
    // Predicated region
    $region13: #{tpu_custom_call.1} parent=5 // pred_check
      %p116 = pneg %p115
    $region14: #{tpu_custom_call.1} parent=5 // pred_check_branch
      %118 = sbr.rel (%p116) target = $region16
    $region15: #{tpu_custom_call.1} parent=5 // pred_region
      // Predicated region
      $region17: #{tpu_custom_call.1} parent=15 // pred_check
        %p119 = pneg %p42
      $region18: #{tpu_custom_call.1} parent=15 // pred_check_branch
        %121 = sbr.rel (%p119) target = $region20
      $region19: #{tpu_custom_call.1} parent=15 // pred_region
        %p122 = scmp.lt.s32.totalorder %s15, 2
        %s123 = scalar_select %p122, %s15, 2
        %p124 = scmp.lt.s32.totalorder %s16, 0
        %s125 = scalar_select %p124, %s16, 0
        %s126 = sadd.s32 %s125, %s123
        %s127 = smul.addr %s126, 8
        %s128 = scalar_lea.vmem %s0, %s127
      $region20: #{tpu_custom_call.1} parent=15 // pred_fallthru
        _
      // Predicated region
      $region21: #{tpu_custom_call.1} parent=15 // pred_check
        %p129 = pneg %p68
      $region22: #{tpu_custom_call.1} parent=15 // pred_check_branch
        %131 = sbr.rel (%p129) target = $region24
      $region23: #{tpu_custom_call.1} parent=15 // pred_region
        %p132 = scmp.lt.s32.totalorder %s15, 2
        %s133 = scalar_select %p132, %s15, 2
        %s134 = smul.addr %s133, 8
        %s135 = scalar_lea.vmem %s1, %s134
      $region24: #{tpu_custom_call.1} parent=15 // pred_fallthru
        _
    $region16: #{tpu_custom_call.1} parent=5 // pred_fallthru
      _
    %p136 = scmp.le.s32.totalorder 1, %s8
    %p137 = scmp.lt.s32.totalorder %s8, 4
    %p138 = pnand %p136, %p137
    %p139 = pneg %p138
    // Predicated region
    $region25: #{tpu_custom_call.1} parent=5 // pred_check
      _
    $region26: #{tpu_custom_call.1} parent=5 // pred_check_branch
      %141 = sbr.rel (%p138) target = $region28
    $region27: #{tpu_custom_call.1} parent=5 // pred_region
      %s142 = ssub.s32 %s8, 1
      %p143 = scmp.lt.s32.totalorder %s17, 2
      %s144 = scalar_select %p143, %s17, 2
      %p145 = scmp.lt.s32.totalorder %s18, 0
      %s146 = scalar_select %p145, %s18, 0
      %s147 = sadd.s32 %s146, %s144
      %s148 = smul.addr %s147, 8
      %s149 = scalar_lea.vmem %s0, %s148
      %p150 = pneg %p48
      %p151 = pneg %p45
      %p152 = scmp.lt.s32.totalorder %s17, 2
      %s153 = scalar_select %p152, %s17, 2
      %s154 = smul.addr %s153, 8
      %s155 = scalar_lea.vmem %s1, %s154
      %p156 = pneg %p74
      %p157 = pneg %p71
      %p158 = pneg %p100
      %p159 = pneg %p97
      %p160 = scmp.lt.s32.totalorder %s17, 2
      %s161 = scalar_select %p160, %s17, 2
      %s162 = smul.addr %s161, 8
      %s163 = scalar_lea.vmem %s2, %s162
      %p164 = scmp.lt.s32.totalorder %s17, 2
      %s165 = scalar_select %p164, %s17, 2
      %p166 = scmp.lt.s32.totalorder %s18, 0
      %s167 = scalar_select %p166, %s18, 0
      %s168 = sadd.s32 %s167, %s165
      %s169 = smul.addr %s168, 8
      %s170 = scalar_lea.vmem %s0, %s169
      %p171 = scmp.lt.s32.totalorder %s17, 2
      %s172 = scalar_select %p171, %s17, 2
      %s173 = smul.addr %s172, 8
      %s174 = scalar_lea.vmem %s1, %s173
      %p175 = scmp.lt.s32.totalorder %s17, 2
      %s176 = scalar_select %p175, %s17, 2
      %s177 = smul.addr %s176, 8
      %s178 = scalar_lea.vmem %s2, %s177
      %p179 = scmp.eq.s32.totalorder %s18, 0
      // Predicated region
      $region29: #{tpu_custom_call.1} parent=27 // pred_check
        %p180 = pneg %p179
      $region30: #{tpu_custom_call.1} parent=27 // pred_check_branch
        %182 = sbr.rel (%p180) target = $region32
      $region31: #{tpu_custom_call.1} parent=27 // pred_region
        %vm183 = vcmask 7168
        %184 = vst.msk [vmem:[#allocation2] sm:$0xff] %vm183, -inf
        %185 = vst.msk [vmem:[#allocation3] sm:$0xff] %vm183, 0.0
        %186 = vst.msk [vmem:[#allocation4] sm:$0xff] %vm183, 0.0
      $region32: #{tpu_custom_call.1} parent=27 // pred_fallthru
        _
      %v187 = vld [vmem:[%s170] sm:$0xff]
      %v188 = vlaneseq
      %v189 = vand.u32 %v188, 127
      %v190 = vld [vmem:[%s174] sm:$0xff]
      %s191 = smul.u32 %s18, 32
      %v192 = vstv %s191
      %v193 = vsub.s32 %v190, %v192
      %194 = vset.pattern.permute.xlu0 0
      %195 = vperm.xlu0 %194, %v193
      %v196 = vpop.permute.xlu0 %195
      %vm197 = vcmp.eq.s32.totalorder %v189, %v196
      %v198 = vsel %vm197, %v187, 0.0
      %vm199 = vcmask 261120
      %v200 = vsel %vm199, %v198, 0.0
      %201 = vadd.xlane.f32.xlu0 %v200
      %v202 = vpop.xlane.xlu0 %201
      %v203 = vld [vmem:[#allocation4] sm:$0xff]
      %v204 = vadd.f32 %v203, %v202
      %vm205 = vcmask 7168
      %206 = vst.msk [vmem:[#allocation4] sm:$0xff] %vm205, %v204
      %v207 = vld [vmem:[#allocation2] sm:$0xff]
      %v208 = vsel %vm199, %v187, -inf
      %209 = vmax.xlane.f32.xlu0 %v208
      %v210 = vpop.xlane.xlu0 %209
      %v211 = vmax.f32 %v207, %v210
      %213 = vset.pattern.permute.xlu0 0
      %214 = vperm.xlu0 %213, %v211
      %v215 = vpop.permute.xlu0 %214
      %v217 = vsub.f32 %v187, %v215
      %v218 = vmul.f32 %v217, 1.442695
      %v219 = vpow.pop %v218
      %v220 = vsub.f32 %v207, %v211
      %v221 = vmul.f32 %v220, 1.442695
      %v222 = vpow.pop %v221
      %v223 = vld [vmem:[#allocation3] sm:$0xff]
      %v224 = vmul.f32 %v223, %v222
      %v225 = vsel %vm199, %v219, 0.0
      %226 = vadd.xlane.f32.xlu0 %v225
      %v227 = vpop.xlane.xlu0 %226
      %v228 = vadd.f32 %v224, %v227
      %229 = vst.msk [vmem:[#allocation3] sm:$0xff] %vm205, %v228
      %230 = vst.msk [vmem:[#allocation2] sm:$0xff] %vm205, %v211
      // Predicated region
      $region33: #{tpu_custom_call.1} parent=27 // pred_check
        %p231 = pneg %p179
      $region34: #{tpu_custom_call.1} parent=27 // pred_check_branch
        %233 = sbr.rel (%p231) target = $region36
      $region35: #{tpu_custom_call.1} parent=27 // pred_region
        %v234 = vld [vmem:[#allocation3] sm:$0xff]
        %v235 = vlog2.pop %v234
        %v236 = vmul.f32 %v235, 0.6931472
        %v237 = vld [vmem:[#allocation2] sm:$0xff]
        %v238 = vadd.f32 %v236, %v237
        %v239 = vld [vmem:[#allocation4] sm:$0xff]
        %v240 = vsub.f32 %v238, %v239
        %v241 = vlaneseq
        %v242 = vshrl.u32 %v241, 7
        %s243 = smul.u32 %s17, 8
        %v244 = vstv %s243
        %v245 = vadd.s32 %v242, %v244
        %vm246 = vcmp.lt.s32.totalorder %v245, 20
        %v247 = vsel %vm246, %v240, 0.0
        %248 = vst.msk [vmem:[%s178] sm:$0xff] %vm205, %v247
      $region36: #{tpu_custom_call.1} parent=27 // pred_fallthru
        _
      %p249 = scmp.lt.s32.totalorder %s17, 2
      %s250 = scalar_select %p249, %s17, 2
      %s251 = smul.addr %s250, 8
      %s252 = scalar_lea.vmem %s2, %s251
      // Predicated region
      $region37: #{tpu_custom_call.1} parent=27 // pred_check
        %p253 = pneg %p97
      $region38: #{tpu_custom_call.1} parent=27 // pred_check_branch
        %255 = sbr.rel (%p253) target = $region40
      $region39: #{tpu_custom_call.1} parent=27 // pred_region
        _
      $region40: #{tpu_custom_call.1} parent=27 // pred_fallthru
        _
    $region28: #{tpu_custom_call.1} parent=5 // pred_fallthru
      _
    %p256 = scmp.le.s32.totalorder 2, %s8
    // Predicated region
    $region41: #{tpu_custom_call.1} parent=5 // pred_check
      %p257 = pneg %p256
    $region42: #{tpu_custom_call.1} parent=5 // pred_check_branch
      %259 = sbr.rel (%p257) target = $region44
    $region43: #{tpu_custom_call.1} parent=5 // pred_region
      %s260 = ssub.s32 %s8, 2
      // Predicated region
      $region45: #{tpu_custom_call.1} parent=43 // pred_check
        %p261 = pneg %p103
      $region46: #{tpu_custom_call.1} parent=43 // pred_check_branch
        %263 = sbr.rel (%p261) target = $region48
      $region47: #{tpu_custom_call.1} parent=43 // pred_region
        %p264 = scmp.lt.s32.totalorder %s19, 2
        %s265 = scalar_select %p264, %s19, 2
        %s266 = smul.addr %s265, 8
        %s267 = scalar_lea.vmem %s2, %s266
      $region48: #{tpu_custom_call.1} parent=43 // pred_fallthru
        _
    $region44: #{tpu_custom_call.1} parent=5 // pred_fallthru
      _
  $region6: #{tpu_custom_call.1} parent=0 // loop_footer
    %s12 = sadd.s32 1, %s8
  $region7: #{tpu_custom_call.1} parent=0 // loop_footer_branch
    %7 = sbr.rel target = $region3
  $region8: #{tpu_custom_call.1} parent=0 // loop_exit
    _

</llo_original>
